<compile_context>
chip_gen: v6e
topology: v6e:2x2x1
jax: 0.10.0
libtpu: 0.0.40
codegen_flags: <defaults>
</compile_context>

<pallas_src>
import jax
import jax.numpy as jnp
from jax.experimental import pallas as pl
from jax.experimental.pallas import tpu as pltpu

BATCH = 1
SEQ = 1            # module's sequence_length (kernel itself handles any seq)
INPUT = 5
HIDDEN = 5
CLASSES = 5
NUM_LAYERS = 1

# Lane layout of the 128-wide activation vector:
LANES = 128
X_LO, X_HI = 0, INPUT                 # lanes 0:5   -> x_t
H_LO, H_HI = INPUT, INPUT + HIDDEN    # lanes 5:10  -> h_{t-1} / h_t
ONE_LANE = INPUT + HIDDEN             # lane 10     -> constant 1 (folds the RNN bias)

# Packed-parameter slab layout (f32, SLAB_ROWS x 128 lanes):
W_REC_ROW0 = 0                        # rows   0:128 -> recurrent block (x,h,1 -> pre at lanes 5:10)
W_FC_ROW0 = LANES                     # rows 128:256 -> FC block        (h     -> logits at lanes 0:5)
B_FC_ROW = 2 * LANES                  # row  256     -> b_fc at lanes 0:5
SLAB_ROWS = 2 * LANES + 8             # 264 (bias block padded to 8 sublanes)


def _rnn_fc_seq_kernel(x_ref, p_ref, hN_ref, out_ref, h_carry):
    """One grid step == one RNN time step.

    x_ref   : [1, BATCH, 128] f32  -- x_t at lanes 0:5, constant 1 at lane 10,
                                      (step 0 additionally carries h0 at lanes 5:10)
    p_ref   : [SLAB_ROWS, 128] f32 -- weight slab, VMEM-resident for the whole grid
    hN_ref  : [BATCH, 128]    f32  -- final hidden (block-resident, written back once)
    out_ref : [1, BATCH, 128] f32  -- logits for this step at lanes 0:5
    h_carry : VMEM scratch [BATCH, 128] f32 -- hidden state carried across steps
    """
    t = pl.program_id(0)

    @pl.when(t == 0)
    def _():
        # h0 is folded into x_ref[0] (lanes 5:10) by the wrapper, so the carry starts at 0.
        h_carry[...] = jnp.zeros_like(h_carry)

    # "concat(x_t, h_{t-1}, 1)" as a disjoint-lane add (no lane movement / relayout).
    xh = x_ref[0] + h_carry[...]                                         # [1, 128]

    # h_t = tanh([x_t, h_{t-1}, 1] @ [W_ih^T ; W_hh^T ; b_ih+b_hh])  -- one f32 MXU pass.
    pre = jnp.dot(xh, p_ref[W_REC_ROW0:W_REC_ROW0 + LANES, :],
                  preferred_element_type=jnp.float32,
                  precision=jax.lax.Precision.HIGHEST)                   # [1, 128]
    h_full = jnp.tanh(pre)              # hidden at lanes 5:10; every other lane is tanh(0)=0
    h_carry[...] = h_full
    hN_ref[...] = h_full                # resident block; single HBM writeback at grid end

    # logits_t = h_t @ W_fc^T + b_fc    -- full-128 contraction (zero lanes contribute 0).
    out_ref[0] = (jnp.dot(h_full, p_ref[W_FC_ROW0:W_FC_ROW0 + LANES, :],
                          preferred_element_type=jnp.float32,
                          precision=jax.lax.Precision.HIGHEST)
                  + p_ref[B_FC_ROW:B_FC_ROW + 1, :])


def pack_params(params):
    """Build the (SLAB_ROWS, 128) f32 parameter slab ONCE, outside the per-call path.

    Zero padding everywhere outside the written sub-blocks is load-bearing (see header).
    """
    w_ih = params["w_ih"].astype(jnp.float32)   # [HIDDEN, INPUT]
    w_hh = params["w_hh"].astype(jnp.float32)   # [HIDDEN, HIDDEN]
    w_fc = params["w_fc"].astype(jnp.float32)   # [CLASSES, HIDDEN]
    b_cat = (params["b_ih"] + params["b_hh"]).astype(jnp.float32)        # [HIDDEN]
    b_fc = params["b_fc"].astype(jnp.float32)                            # [CLASSES]

    slab = jnp.zeros((SLAB_ROWS, LANES), jnp.float32)
    # Recurrent block (rows 0:128): output lands at lanes H_LO:H_HI.
    slab = slab.at[X_LO:X_HI, H_LO:H_HI].set(w_ih.T)        # rows i  , cols 5+j : W_ih[j, i]
    slab = slab.at[H_LO:H_HI, H_LO:H_HI].set(w_hh.T)        # rows 5+k, cols 5+j : W_hh[j, k]
    slab = slab.at[ONE_LANE, H_LO:H_HI].set(b_cat)          # row 10  , cols 5+j : b_ih+b_hh
    # FC block (rows 128:256): h at lanes 5:10 -> logits at lanes 0:5.
    slab = slab.at[W_FC_ROW0 + H_LO:W_FC_ROW0 + H_HI, 0:CLASSES].set(w_fc.T)
    # FC bias row (row 256, inside an aligned 8-row pad).
    slab = slab.at[B_FC_ROW, 0:CLASSES].set(b_fc)
    return slab


def rnn_fc_forward(hidden, x, packed_slab):
    """Mirrors Model.forward(hidden, x) -> (hidden, out).  packed_slab = pack_params(params)."""
    seq = x.shape[1]                                         # batch_first; BATCH == 1 per spec
    x3 = jnp.reshape(x, (seq, BATCH, INPUT)).astype(jnp.float32)
    # Flat reshape of hidden is only valid because NUM_LAYERS == BATCH == 1 (per the spec);
    # otherwise PyTorch's (num_layers, batch, hidden) convention would need a transpose.
    h0 = jnp.reshape(hidden, (BATCH, HIDDEN)).astype(jnp.float32)

    # Activation prep is done once per forward and amortized over the whole sequence:
    # lanes 0:5 = x_t, lane 10 = 1 (bias lane), lanes 5:10 of step 0 = initial hidden.
    xpad = jnp.zeros((seq, BATCH, LANES), jnp.float32)
    xpad = xpad.at[:, :, X_LO:X_HI].set(x3)
    xpad = xpad.at[:, :, ONE_LANE].set(1.0)
    xpad = xpad.at[0, :, H_LO:H_HI].set(h0)

    h_last, logits = pl.pallas_call(
        _rnn_fc_seq_kernel,
        grid=(seq,),
        in_specs=[
            pl.BlockSpec((1, BATCH, LANES), lambda t: (t, 0, 0)),     # x_t fetched per step
            pl.BlockSpec((SLAB_ROWS, LANES), lambda t: (0, 0)),       # weights VMEM-resident
        ],
        out_specs=[
            pl.BlockSpec((BATCH, LANES), lambda t: (0, 0)),           # final hidden (resident)
            pl.BlockSpec((1, BATCH, LANES), lambda t: (t, 0, 0)),     # per-step logits
        ],
        out_shape=[
            jax.ShapeDtypeStruct((BATCH, LANES), jnp.float32),
            jax.ShapeDtypeStruct((seq, BATCH, LANES), jnp.float32),
        ],
        scratch_shapes=[pltpu.VMEM((BATCH, LANES), jnp.float32)],     # hidden-state carry
        compiler_params=pltpu.CompilerParams(
            dimension_semantics=("arbitrary",)),                      # time steps are sequential
    )(xpad, packed_slab)

    hidden_new = jnp.reshape(h_last[:, H_LO:H_HI], (NUM_LAYERS, BATCH, HIDDEN))
    out = jnp.reshape(logits[:, :, 0:CLASSES], (seq * BATCH, CLASSES))
    return hidden_new, out


def init_params(key):
    # Deterministic parameter init (shapes match nn.RNN / nn.Linear defaults).
    ks = jax.random.split(key, 6)
    bound_rnn = 1.0 / jnp.sqrt(HIDDEN)
    bound_fc = 1.0 / jnp.sqrt(INPUT)
    u = lambda k, shape, b: jax.random.uniform(k, shape, jnp.float32, -b, b)
    return {
        "w_ih": u(ks[0], (HIDDEN, INPUT), bound_rnn),   # weight_ih_l0
        "w_hh": u(ks[1], (HIDDEN, HIDDEN), bound_rnn),  # weight_hh_l0
        "b_ih": u(ks[2], (HIDDEN,), bound_rnn),         # bias_ih_l0
        "b_hh": u(ks[3], (HIDDEN,), bound_rnn),         # bias_hh_l0
        "w_fc": u(ks[4], (CLASSES, HIDDEN), bound_fc),  # fc.weight
        "b_fc": u(ks[5], (CLASSES,), bound_fc),         # fc.bias
    }


def reference_forward(hidden, x, params):
    # Pure-JAX f32 reference of the same forward pass (general seq, batch=1).
    hp = jax.lax.Precision.HIGHEST
    seq = x.shape[1]
    h = jnp.reshape(hidden, (BATCH, HIDDEN)).astype(jnp.float32)
    outs = []
    for t in range(seq):
        xt = x[:, t, :].astype(jnp.float32)
        h = jnp.tanh(jnp.dot(xt, params["w_ih"].T, precision=hp) + params["b_ih"]
                     + jnp.dot(h, params["w_hh"].T, precision=hp) + params["b_hh"])
        outs.append(jnp.dot(h, params["w_fc"].T, precision=hp) + params["b_fc"])
    out = jnp.concatenate(outs, axis=0)                  # (seq*BATCH, CLASSES) for BATCH == 1
    return jnp.reshape(h, (NUM_LAYERS, BATCH, HIDDEN)), out


if __name__ == "__main__":
    key = jax.random.PRNGKey(0)
    pkey, xkey, hkey, x2key = jax.random.split(key, 4)
    params = init_params(pkey)

    # Parameter packing is done ONCE, outside the per-call path.
    packed_slab = jax.block_until_ready(pack_params(params))
    forward = jax.jit(rnn_fc_forward)

    # --- Test 1: exactly the module's shapes (batch=1, seq=1) with init_hidden() zeros. ---
    hidden0 = jnp.zeros((BATCH, NUM_LAYERS, HIDDEN), jnp.float32)
    x = jax.random.normal(xkey, (BATCH, SEQ, INPUT), jnp.float32)
    hidden_new, out = forward(hidden0, x, packed_slab)
    jax.block_until_ready((hidden_new, out))
    ref_hidden, ref_out = reference_forward(hidden0, x, params)
    assert hidden_new.shape == (NUM_LAYERS, BATCH, HIDDEN)
    assert out.shape == (BATCH * SEQ, CLASSES)
    assert jnp.allclose(hidden_new, ref_hidden, atol=1e-4, rtol=1e-4)
    assert jnp.allclose(out, ref_out, atol=1e-4, rtol=1e-4)

    # --- Test 2: nonzero initial hidden + longer sequence (exercises the in-kernel recurrence). ---
    seq2 = 4
    hidden1 = 0.5 * jax.random.normal(hkey, (NUM_LAYERS, BATCH, HIDDEN), jnp.float32)
    x2 = jax.random.normal(x2key, (BATCH, seq2, INPUT), jnp.float32)
    hidden_new2, out2 = forward(hidden1, x2, packed_slab)
    jax.block_until_ready((hidden_new2, out2))
    ref_hidden2, ref_out2 = reference_forward(hidden1, x2, params)
    assert hidden_new2.shape == (NUM_LAYERS, BATCH, HIDDEN)
    assert out2.shape == (BATCH * seq2, CLASSES)
    assert jnp.allclose(hidden_new2, ref_hidden2, atol=1e-4, rtol=1e-4)
    assert jnp.allclose(out2, ref_out2, atol=1e-4, rtol=1e-4)

    print("KERNEL_OK")
</pallas_src>

<mosaic_0001>
module attributes {stable_mosaic.version = 11 : i64} {
  func.func @_rnn_fc_seq_kernel(%arg0: i32, %arg1: memref<1x1x128xf32, #tpu.memory_space<vmem>>, %arg2: memref<264x128xf32, #tpu.memory_space<vmem>>, %arg3: memref<1x128xf32, #tpu.memory_space<vmem>>, %arg4: memref<1x1x128xf32, #tpu.memory_space<vmem>>, %arg5: memref<1x128xf32, #tpu.memory_space<vmem>>) attributes {dimension_semantics = [#tpu.dimension_semantics<arbitrary>], iteration_bounds = array<i64: 1>, scalar_prefetch = 0 : i64, scratch_operands = 1 : i64, tpu.core_type = #tpu.core_type<tc>, window_params = [{transform_indices = @transform_0, window_bounds = array<i64: 1, 1, 128>}, {pipeline_mode = #tpu.pipeline_mode<synchronous>, transform_indices = @transform_1, window_bounds = array<i64: 264, 128>}, {pipeline_mode = #tpu.pipeline_mode<synchronous>, transform_indices = @transform_2, window_bounds = array<i64: 1, 128>}, {transform_indices = @transform_3, window_bounds = array<i64: 1, 1, 128>}]} {
    %c0_i32 = arith.constant 0 : i32
    %0 = arith.cmpi eq, %arg0, %c0_i32 : i32
    %1 = arith.extui %0 : i1 to i32
    %c0_i32_0 = arith.constant 0 : i32
    %2 = arith.cmpi ne, %1, %c0_i32_0 : i32
    scf.if %2 {
      %cst_17 = arith.constant 0.000000e+00 : f32
      %19 = vector.broadcast %cst_17 : f32 to vector<1x128xf32>
      %c0_18 = arith.constant 0 : index
      %c0_19 = arith.constant 0 : index
      %20 = vector.load %arg5[%c0_18, %c0_19] : memref<1x128xf32, #tpu.memory_space<vmem>>, vector<1x128xf32>
      tpu.vector_store %arg5[%c0_18, %c0_19], %19 {strides = array<i32>} : memref<1x128xf32, #tpu.memory_space<vmem>>, vector<1x128xf32>,
    } else {
    }
    %c0 = arith.constant 0 : index
    %c0_1 = arith.constant 0 : index
    %c0_2 = arith.constant 0 : index
    %3 = vector.load %arg1[%c0, %c0_1, %c0_2] : memref<1x1x128xf32, #tpu.memory_space<vmem>>, vector<1x1x128xf32>
    %4 = vector.shape_cast %3 : vector<1x1x128xf32> to vector<1x128xf32>
    %c0_3 = arith.constant 0 : index
    %c0_4 = arith.constant 0 : index
    %5 = vector.load %arg5[%c0_3, %c0_4] : memref<1x128xf32, #tpu.memory_space<vmem>>, vector<1x128xf32>
    %6 = arith.addf %4, %5 : vector<1x128xf32>
    %c0_5 = arith.constant 0 : index
    %c0_6 = arith.constant 0 : index
    %7 = vector.load %arg2[%c0_5, %c0_6] : memref<264x128xf32, #tpu.memory_space<vmem>>, vector<128x128xf32>
    %cst = arith.constant dense<0.000000e+00> : vector<1x128xf32>
    %8 = tpu.matmul %6, %7, %cst {dimension_numbers = #tpu.dot_dimension_numbers<[1], [0], [0], [1], [0, 0, 1, 1], [], []>, precision = #tpu.contract_precision<fp32>} : vector<1x128xf32>, vector<128x128xf32>, vector<1x128xf32> -> vector<1x128xf32>
    %9 = math.tanh %8 : vector<1x128xf32>
    %c0_7 = arith.constant 0 : index
    %c0_8 = arith.constant 0 : index
    %10 = vector.load %arg5[%c0_7, %c0_8] : memref<1x128xf32, #tpu.memory_space<vmem>>, vector<1x128xf32>
    tpu.vector_store %arg5[%c0_7, %c0_8], %9 {strides = array<i32>} : memref<1x128xf32, #tpu.memory_space<vmem>>, vector<1x128xf32>,
    %c0_9 = arith.constant 0 : index
    %c0_10 = arith.constant 0 : index
    %11 = vector.load %arg3[%c0_9, %c0_10] : memref<1x128xf32, #tpu.memory_space<vmem>>, vector<1x128xf32>
    tpu.vector_store %arg3[%c0_9, %c0_10], %9 {strides = array<i32>} : memref<1x128xf32, #tpu.memory_space<vmem>>, vector<1x128xf32>,
    %c128 = arith.constant 128 : index
    %c0_11 = arith.constant 0 : index
    %12 = vector.load %arg2[%c128, %c0_11] : memref<264x128xf32, #tpu.memory_space<vmem>>, vector<128x128xf32>
    %cst_12 = arith.constant dense<0.000000e+00> : vector<1x128xf32>
    %13 = tpu.matmul %9, %12, %cst_12 {dimension_numbers = #tpu.dot_dimension_numbers<[1], [0], [0], [1], [0, 0, 1, 1], [], []>, precision = #tpu.contract_precision<fp32>} : vector<1x128xf32>, vector<128x128xf32>, vector<1x128xf32> -> vector<1x128xf32>
    %c256 = arith.constant 256 : index
    %c0_13 = arith.constant 0 : index
    %14 = vector.load %arg2[%c256, %c0_13] : memref<264x128xf32, #tpu.memory_space<vmem>>, vector<1x128xf32>
    %15 = arith.addf %13, %14 : vector<1x128xf32>
    %c0_14 = arith.constant 0 : index
    %c0_15 = arith.constant 0 : index
    %c0_16 = arith.constant 0 : index
    %16 = vector.load %arg4[%c0_14, %c0_15, %c0_16] : memref<1x1x128xf32, #tpu.memory_space<vmem>>, vector<1x1x128xf32>
    %17 = vector.shape_cast %16 : vector<1x1x128xf32> to vector<1x128xf32>
    %18 = vector.shape_cast %15 : vector<1x128xf32> to vector<1x1x128xf32>
    tpu.vector_store %arg4[%c0_14, %c0_15, %c0_16], %18 {strides = array<i32>} : memref<1x1x128xf32, #tpu.memory_space<vmem>>, vector<1x1x128xf32>,
    return
  }
  func.func @transform_0(%arg0: i32) -> (i32, i32, i32) {
    %c0_i32 = arith.constant 0 : i32
    %c0_i32_0 = arith.constant 0 : i32
    %c0_i32_1 = arith.constant 0 : i32
    return %arg0, %c0_i32, %c0_i32_0 : i32, i32, i32
  }
  func.func @transform_1(%arg0: i32) -> (i32, i32) {
    %c0_i32 = arith.constant 0 : i32
    %c0_i32_0 = arith.constant 0 : i32
    %c0_i32_1 = arith.constant 0 : i32
    return %c0_i32, %c0_i32_0 : i32, i32
  }
  func.func @transform_2(%arg0: i32) -> (i32, i32) {
    %c0_i32 = arith.constant 0 : i32
    %c0_i32_0 = arith.constant 0 : i32
    %c0_i32_1 = arith.constant 0 : i32
    return %c0_i32, %c0_i32_0 : i32, i32
  }
  func.func @transform_3(%arg0: i32) -> (i32, i32, i32) {
    %c0_i32 = arith.constant 0 : i32
    %c0_i32_0 = arith.constant 0 : i32
    %c0_i32_1 = arith.constant 0 : i32
    return %arg0, %c0_i32, %c0_i32_0 : i32, i32, i32
  }
}

</mosaic_0001>

<llo_original>
// kernel: rnn_fc_forward.1
$region0: #{rnn_fc_forward.1}
  #allocation0 [shape = 'u32[]', space=smem, size = 0x4, offset = 0x4, fixed_abs, tag = 'smem constant byte address 0x4 - core index']
  #allocation1 [shape = 'u32[144,128]{1,0:T(1,128)}', space=vmem, size = 0x12000, scoped, tag = 'internal scratch']
  #allocation2 [shape = 'f32[1,128]{1,0:T(1,128)}', space=vmem, size = 0x200, scoped, tag = 'scratch operand']
  %s0 = inlined_call_operand.vmem [shape: f32[1,1,128], index: 0, kind: input, shape index: {}]
  %s1 = inlined_call_operand.hbm [shape: f32[264,128], index: 1, kind: input, shape index: {}]
  %s2 = inlined_call_operand.vmem [shape: f32[1,128], index: 2, kind: output, shape index: {0}]
  %s3 = inlined_call_operand.vmem [shape: f32[1,1,128], index: 3, kind: output, shape index: {1}]
  %4 = xla_tuple %s2, %s3
  %s5 = sld [smem:[#allocation0]]
  $region34: #{rnn_fc_forward.1} parent=0
    _
  %s7 = ssub.s32 1, %s5
  %s8 = scalar_select 0, %s7, %s5
  $region1: #{rnn_fc_forward.1} parent=0
    #allocation3 [shape = 'u8[135168]{0}', space=vmem, size = 0x21000, scoped, tag = 'input window, operand 1, single buffered']
    #allocation4 [shape = 's32[1]{0}', space=sflag, size = 0x4, scoped, tag = 'scoped memory for rnn_fc_forward.1']
    %9 = vsyncpa [#allocation4], 0
    // Predicated region
    $region2: #{rnn_fc_forward.1} parent=1 // pred_check
      _
    $region3: #{rnn_fc_forward.1} parent=1 // pred_check_branch
      %11 = sbr.rel (0) target = $region5
    $region4: #{rnn_fc_forward.1} parent=1 // pred_region
      _
    $region5: #{rnn_fc_forward.1} parent=1 // pred_fallthru
      _
    // Predicated region
    $region6: #{rnn_fc_forward.1} parent=1 // pred_check
      _
    $region7: #{rnn_fc_forward.1} parent=1 // pred_check_branch
      %13 = sbr.rel (0) target = $region9
    $region8: #{rnn_fc_forward.1} parent=1 // pred_region
      %s15 = ssub.s32 4224, 4224
      %16 = vsyncadd [#allocation4], %s15
      %s17 = sshll.u32 [#allocation3], 4
      %s18 = int_to_ptr.vmem [resolvable:$true] %s17
      %23 = dma.hbm_to_vmem [thread:$0]  %s1, 4224, %s18, [#allocation4], 128, 128, 8
    $region9: #{rnn_fc_forward.1} parent=1 // pred_fallthru
      _
    // Predicated region
    $region10: #{rnn_fc_forward.1} parent=1 // pred_check
      _
    $region11: #{rnn_fc_forward.1} parent=1 // pred_check_branch
      %25 = sbr.rel (0) target = $region13
    $region12: #{rnn_fc_forward.1} parent=1 // pred_region
      %26 = dma.done [#allocation4], 4224
    $region13: #{rnn_fc_forward.1} parent=1 // pred_fallthru
      _
    %p27 = scmp.eq.s32.totalorder 0, 0
    // Predicated region
    $region14: #{rnn_fc_forward.1} parent=1 // pred_check
      %p28 = pneg %p27
    $region15: #{rnn_fc_forward.1} parent=1 // pred_check_branch
      %30 = sbr.rel (%p28) target = $region17
    $region16: #{rnn_fc_forward.1} parent=1 // pred_region
      %31 = vst [vmem:[#allocation2] sm:$0x1] 0.0
    $region17: #{rnn_fc_forward.1} parent=1 // pred_fallthru
      _
    %v32 = vld [vmem:[%s0] sm:$0x1]
    %v33 = vld [vmem:[#allocation2] sm:$0x1]
    %v34 = vadd.f32 %v32, %v33
    %v35 = vld [vmem:[#allocation3] sm:$0xff]
    %v36 = vld [vmem:[#allocation3 + $0x8] sm:$0xff]
    %v37 = vld [vmem:[#allocation3 + $0x10] sm:$0xff]
    %v38 = vld [vmem:[#allocation3 + $0x18] sm:$0xff]
    %v39 = vld [vmem:[#allocation3 + $0x20] sm:$0xff]
    %v40 = vld [vmem:[#allocation3 + $0x28] sm:$0xff]
    %v41 = vld [vmem:[#allocation3 + $0x30] sm:$0xff]
    %v42 = vld [vmem:[#allocation3 + $0x38] sm:$0xff]
    %v43 = vld [vmem:[#allocation3 + $0x40] sm:$0xff]
    %v44 = vld [vmem:[#allocation3 + $0x48] sm:$0xff]
    %v45 = vld [vmem:[#allocation3 + $0x50] sm:$0xff]
    %v46 = vld [vmem:[#allocation3 + $0x58] sm:$0xff]
    %v47 = vld [vmem:[#allocation3 + $0x60] sm:$0xff]
    %v48 = vld [vmem:[#allocation3 + $0x68] sm:$0xff]
    %v49 = vld [vmem:[#allocation3 + $0x70] sm:$0xff]
    %v50 = vld [vmem:[#allocation3 + $0x78] sm:$0xff]
    %51 = vmatprep.subr.mxu0 0.0
    %v52 = vand.u32 %v50, 4294901760
    %53 = vmatpush1.msra.mxu0 %v52
    %54 = vmatprep.subr.mxu0 0.0
    %v55 = vand.u32 %v49, 4294901760
    %56 = vmatpush1.msra.mxu0 %v55
    %57 = vmatprep.subr.mxu0 0.0
    %v58 = vand.u32 %v48, 4294901760
    %59 = vmatpush1.msra.mxu0 %v58
    %60 = vmatprep.subr.mxu0 0.0
    %v61 = vand.u32 %v47, 4294901760
    %62 = vmatpush1.msra.mxu0 %v61
    %63 = vmatprep.subr.mxu0 0.0
    %v64 = vand.u32 %v46, 4294901760
    %65 = vmatpush1.msra.mxu0 %v64
    %66 = vmatprep.subr.mxu0 0.0
    %v67 = vand.u32 %v45, 4294901760
    %68 = vmatpush1.msra.mxu0 %v67
    %69 = vmatprep.subr.mxu0 0.0
    %v70 = vand.u32 %v44, 4294901760
    %71 = vmatpush1.msra.mxu0 %v70
    %72 = vmatprep.subr.mxu0 0.0
    %v73 = vand.u32 %v43, 4294901760
    %74 = vmatpush1.msra.mxu0 %v73
    %75 = vmatprep.subr.mxu0 0.0
    %v76 = vand.u32 %v42, 4294901760
    %77 = vmatpush1.msra.mxu0 %v76
    %78 = vmatprep.subr.mxu0 0.0
    %v79 = vand.u32 %v41, 4294901760
    %80 = vmatpush1.msra.mxu0 %v79
    %81 = vmatprep.subr.mxu0 0.0
    %v82 = vand.u32 %v40, 4294901760
    %83 = vmatpush1.msra.mxu0 %v82
    %84 = vmatprep.subr.mxu0 0.0
    %v85 = vand.u32 %v39, 4294901760
    %86 = vmatpush1.msra.mxu0 %v85
    %87 = vmatprep.subr.mxu0 0.0
    %v88 = vand.u32 %v38, 4294901760
    %89 = vmatpush1.msra.mxu0 %v88
    %90 = vmatprep.subr.mxu0 0.0
    %v91 = vand.u32 %v37, 4294901760
    %92 = vmatpush1.msra.mxu0 %v91
    %93 = vmatprep.subr.mxu0 0.0
    %v94 = vand.u32 %v36, 4294901760
    %95 = vmatpush1.msra.mxu0 %v94
    %96 = vmatprep.subr.mxu0 0.0
    %v97 = vand.u32 %v35, 4294901760
    %98 = vmatpush1.msra.mxu0 %v97
    %99 = vmatprep.subr.mxu0 0.0
    %100 = vmatpush2.msra.mxu0 0.0
    %101 = vmatprep.subr.mxu0 0.0
    %102 = vmatpush2.msra.mxu0 0.0
    %103 = vmatprep.subr.mxu0 0.0
    %104 = vmatpush2.msra.mxu0 0.0
    %105 = vmatprep.subr.mxu0 0.0
    %106 = vmatpush2.msra.mxu0 0.0
    %107 = vmatprep.subr.mxu0 0.0
    %108 = vmatpush2.msra.mxu0 0.0
    %109 = vmatprep.subr.mxu0 0.0
    %110 = vmatpush2.msra.mxu0 0.0
    %111 = vmatprep.subr.mxu0 0.0
    %112 = vmatpush2.msra.mxu0 0.0
    %113 = vmatprep.subr.mxu0 0.0
    %114 = vmatpush2.msra.mxu0 0.0
    %115 = vmatprep.subr.mxu0 0.0
    %116 = vmatpush2.msra.mxu0 0.0
    %117 = vmatprep.subr.mxu0 0.0
    %118 = vmatpush2.msra.mxu0 0.0
    %119 = vmatprep.subr.mxu0 0.0
    %120 = vmatpush2.msra.mxu0 0.0
    %121 = vmatprep.subr.mxu0 0.0
    %122 = vmatpush2.msra.mxu0 0.0
    %123 = vmatprep.subr.mxu0 0.0
    %124 = vmatpush2.msra.mxu0 0.0
    %125 = vmatprep.subr.mxu0 0.0
    %126 = vmatpush2.msra.mxu0 0.0
    %127 = vmatprep.subr.mxu0 0.0
    %128 = vmatpush2.msra.mxu0 0.0
    %129 = vmatprep.subr.mxu0 0.0
    %130 = vmatpush2.msra.mxu0 0.0
    %131 = vmatprep.mubr.f32.mxu0 0.0
    %v132 = vand.u32 %v34, 4294901760
    %v133 = vsub.f32 %v34, %v132
    %v134 = vand.u32 %v133, 4294901760
    %v135 = vsub.f32 %v133, %v134
    %v136 = vand.u32 %v135, 4294901760
    %137 = vmatmul.mubr.f32.gmra.mxu0 %v136
    %v138 = vpop.f32.mrf.mxu0
    %v139 = vadd.f32 0.0, %v138
    %v140 = vpop.f32.mrf.mxu0
    %141 = vdwg.mxu0
    %142 = vmatprep.subr.mxu0 0.0
    %v143 = vand.u32 %v50, 4294901760
    %v144 = vsub.f32 %v50, %v143
    %v145 = vand.u32 %v144, 4294901760
    %v146 = vsub.f32 %v144, %v145
    %v147 = vand.u32 %v146, 4294901760
    %148 = vmatpush1.msra.mxu0 %v147
    %149 = vmatprep.subr.mxu0 0.0
    %v150 = vand.u32 %v49, 4294901760
    %v151 = vsub.f32 %v49, %v150
    %v152 = vand.u32 %v151, 4294901760
    %v153 = vsub.f32 %v151, %v152
    %v154 = vand.u32 %v153, 4294901760
    %155 = vmatpush1.msra.mxu0 %v154
    %156 = vmatprep.subr.mxu0 0.0
    %v157 = vand.u32 %v48, 4294901760
    %v158 = vsub.f32 %v48, %v157
    %v159 = vand.u32 %v158, 4294901760
    %v160 = vsub.f32 %v158, %v159
    %v161 = vand.u32 %v160, 4294901760
    %162 = vmatpush1.msra.mxu0 %v161
    %163 = vmatprep.subr.mxu0 0.0
    %v164 = vand.u32 %v47, 4294901760
    %v165 = vsub.f32 %v47, %v164
    %v166 = vand.u32 %v165, 4294901760
    %v167 = vsub.f32 %v165, %v166
    %v168 = vand.u32 %v167, 4294901760
    %169 = vmatpush1.msra.mxu0 %v168
    %170 = vmatprep.subr.mxu0 0.0
    %v171 = vand.u32 %v46, 4294901760
    %v172 = vsub.f32 %v46, %v171
    %v173 = vand.u32 %v172, 4294901760
    %v174 = vsub.f32 %v172, %v173
    %v175 = vand.u32 %v174, 4294901760
    %176 = vmatpush1.msra.mxu0 %v175
    %177 = vmatprep.subr.mxu0 0.0
    %v178 = vand.u32 %v45, 4294901760
    %v179 = vsub.f32 %v45, %v178
    %v180 = vand.u32 %v179, 4294901760
    %v181 = vsub.f32 %v179, %v180
    %v182 = vand.u32 %v181, 4294901760
    %183 = vmatpush1.msra.mxu0 %v182
    %184 = vmatprep.subr.mxu0 0.0
    %v185 = vand.u32 %v44, 4294901760
    %v186 = vsub.f32 %v44, %v185
    %v187 = vand.u32 %v186, 4294901760
    %v188 = vsub.f32 %v186, %v187
    %v189 = vand.u32 %v188, 4294901760
    %190 = vmatpush1.msra.mxu0 %v189
    %191 = vmatprep.subr.mxu0 0.0
    %v192 = vand.u32 %v43, 4294901760
    %v193 = vsub.f32 %v43, %v192
    %v194 = vand.u32 %v193, 4294901760
    %v195 = vsub.f32 %v193, %v194
    %v196 = vand.u32 %v195, 4294901760
    %197 = vmatpush1.msra.mxu0 %v196
    %198 = vmatprep.subr.mxu0 0.0
    %v199 = vand.u32 %v42, 4294901760
    %v200 = vsub.f32 %v42, %v199
    %v201 = vand.u32 %v200, 4294901760
    %v202 = vsub.f32 %v200, %v201
    %v203 = vand.u32 %v202, 4294901760
    %204 = vmatpush1.msra.mxu0 %v203
    %205 = vmatprep.subr.mxu0 0.0
    %v206 = vand.u32 %v41, 4294901760
    %v207 = vsub.f32 %v41, %v206
    %v208 = vand.u32 %v207, 4294901760
    %v209 = vsub.f32 %v207, %v208
    %v210 = vand.u32 %v209, 4294901760
    %211 = vmatpush1.msra.mxu0 %v210
    %212 = vmatprep.subr.mxu0 0.0
    %v213 = vand.u32 %v40, 4294901760
    %v214 = vsub.f32 %v40, %v213
    %v215 = vand.u32 %v214, 4294901760
    %v216 = vsub.f32 %v214, %v215
    %v217 = vand.u32 %v216, 4294901760
    %218 = vmatpush1.msra.mxu0 %v217
    %219 = vmatprep.subr.mxu0 0.0
    %v220 = vand.u32 %v39, 4294901760
    %v221 = vsub.f32 %v39, %v220
    %v222 = vand.u32 %v221, 4294901760
    %v223 = vsub.f32 %v221, %v222
    %v224 = vand.u32 %v223, 4294901760
    %225 = vmatpush1.msra.mxu0 %v224
    %226 = vmatprep.subr.mxu0 0.0
    %v227 = vand.u32 %v38, 4294901760
    %v228 = vsub.f32 %v38, %v227
    %v229 = vand.u32 %v228, 4294901760
    %v230 = vsub.f32 %v228, %v229
    %v231 = vand.u32 %v230, 4294901760
    %232 = vmatpush1.msra.mxu0 %v231
    %233 = vmatprep.subr.mxu0 0.0
    %v234 = vand.u32 %v37, 4294901760
    %v235 = vsub.f32 %v37, %v234
    %v236 = vand.u32 %v235, 4294901760
    %v237 = vsub.f32 %v235, %v236
    %v238 = vand.u32 %v237, 4294901760
    %239 = vmatpush1.msra.mxu0 %v238
    %240 = vmatprep.subr.mxu0 0.0
    %v241 = vand.u32 %v36, 4294901760
    %v242 = vsub.f32 %v36, %v241
    %v243 = vand.u32 %v242, 4294901760
    %v244 = vsub.f32 %v242, %v243
    %v245 = vand.u32 %v244, 4294901760
    %246 = vmatpush1.msra.mxu0 %v245
    %247 = vmatprep.subr.mxu0 0.0
    %v248 = vand.u32 %v35, 4294901760
    %v249 = vsub.f32 %v35, %v248
    %v250 = vand.u32 %v249, 4294901760
    %v251 = vsub.f32 %v249, %v250
    %v252 = vand.u32 %v251, 4294901760
    %253 = vmatpush1.msra.mxu0 %v252
    %254 = vmatprep.subr.mxu0 0.0
    %255 = vmatpush2.msra.mxu0 0.0
    %256 = vmatprep.subr.mxu0 0.0
    %257 = vmatpush2.msra.mxu0 0.0
    %258 = vmatprep.subr.mxu0 0.0
    %259 = vmatpush2.msra.mxu0 0.0
    %260 = vmatprep.subr.mxu0 0.0
    %261 = vmatpush2.msra.mxu0 0.0
    %262 = vmatprep.subr.mxu0 0.0
    %263 = vmatpush2.msra.mxu0 0.0
    %264 = vmatprep.subr.mxu0 0.0
    %265 = vmatpush2.msra.mxu0 0.0
    %266 = vmatprep.subr.mxu0 0.0
    %267 = vmatpush2.msra.mxu0 0.0
    %268 = vmatprep.subr.mxu0 0.0
    %269 = vmatpush2.msra.mxu0 0.0
    %270 = vmatprep.subr.mxu0 0.0
    %271 = vmatpush2.msra.mxu0 0.0
    %272 = vmatprep.subr.mxu0 0.0
    %273 = vmatpush2.msra.mxu0 0.0
    %274 = vmatprep.subr.mxu0 0.0
    %275 = vmatpush2.msra.mxu0 0.0
    %276 = vmatprep.subr.mxu0 0.0
    %277 = vmatpush2.msra.mxu0 0.0
    %278 = vmatprep.subr.mxu0 0.0
    %279 = vmatpush2.msra.mxu0 0.0
    %280 = vmatprep.subr.mxu0 0.0
    %281 = vmatpush2.msra.mxu0 0.0
    %282 = vmatprep.subr.mxu0 0.0
    %283 = vmatpush2.msra.mxu0 0.0
    %284 = vmatprep.subr.mxu0 0.0
    %285 = vmatpush2.msra.mxu0 0.0
    %286 = vmatprep.mubr.f32.mxu0 0.0
    %v287 = vand.u32 %v34, 4294901760
    %288 = vmatmul.mubr.f32.gmra.mxu0 %v287
    %v289 = vpop.f32.mrf.mxu0
    %v290 = vadd.f32 %v139, %v289
    %v291 = vpop.f32.mrf.mxu0
    %292 = vdwg.mxu0
    %293 = vmatprep.subr.mxu0 0.0
    %v294 = vand.u32 %v50, 4294901760
    %v295 = vsub.f32 %v50, %v294
    %296 = vmatpush1.msra.mxu0 %v295
    %297 = vmatprep.subr.mxu0 0.0
    %v298 = vand.u32 %v49, 4294901760
    %v299 = vsub.f32 %v49, %v298
    %300 = vmatpush1.msra.mxu0 %v299
    %301 = vmatprep.subr.mxu0 0.0
    %v302 = vand.u32 %v48, 4294901760
    %v303 = vsub.f32 %v48, %v302
    %304 = vmatpush1.msra.mxu0 %v303
    %305 = vmatprep.subr.mxu0 0.0
    %v306 = vand.u32 %v47, 4294901760
    %v307 = vsub.f32 %v47, %v306
    %308 = vmatpush1.msra.mxu0 %v307
    %309 = vmatprep.subr.mxu0 0.0
    %v310 = vand.u32 %v46, 4294901760
    %v311 = vsub.f32 %v46, %v310
    %312 = vmatpush1.msra.mxu0 %v311
    %313 = vmatprep.subr.mxu0 0.0
    %v314 = vand.u32 %v45, 4294901760
    %v315 = vsub.f32 %v45, %v314
    %316 = vmatpush1.msra.mxu0 %v315
    %317 = vmatprep.subr.mxu0 0.0
    %v318 = vand.u32 %v44, 4294901760
    %v319 = vsub.f32 %v44, %v318
    %320 = vmatpush1.msra.mxu0 %v319
    %321 = vmatprep.subr.mxu0 0.0
    %v322 = vand.u32 %v43, 4294901760
    %v323 = vsub.f32 %v43, %v322
    %324 = vmatpush1.msra.mxu0 %v323
    %325 = vmatprep.subr.mxu0 0.0
    %v326 = vand.u32 %v42, 4294901760
    %v327 = vsub.f32 %v42, %v326
    %328 = vmatpush1.msra.mxu0 %v327
    %329 = vmatprep.subr.mxu0 0.0
    %v330 = vand.u32 %v41, 4294901760
    %v331 = vsub.f32 %v41, %v330
    %332 = vmatpush1.msra.mxu0 %v331
    %333 = vmatprep.subr.mxu0 0.0
    %v334 = vand.u32 %v40, 4294901760
    %v335 = vsub.f32 %v40, %v334
    %336 = vmatpush1.msra.mxu0 %v335
    %337 = vmatprep.subr.mxu0 0.0
    %v338 = vand.u32 %v39, 4294901760
    %v339 = vsub.f32 %v39, %v338
    %340 = vmatpush1.msra.mxu0 %v339
    %341 = vmatprep.subr.mxu0 0.0
    %v342 = vand.u32 %v38, 4294901760
    %v343 = vsub.f32 %v38, %v342
    %344 = vmatpush1.msra.mxu0 %v343
    %345 = vmatprep.subr.mxu0 0.0
    %v346 = vand.u32 %v37, 4294901760
    %v347 = vsub.f32 %v37, %v346
    %348 = vmatpush1.msra.mxu0 %v347
    %349 = vmatprep.subr.mxu0 0.0
    %v350 = vand.u32 %v36, 4294901760
    %v351 = vsub.f32 %v36, %v350
    %352 = vmatpush1.msra.mxu0 %v351
    %353 = vmatprep.subr.mxu0 0.0
    %v354 = vand.u32 %v35, 4294901760
    %v355 = vsub.f32 %v35, %v354
    %356 = vmatpush1.msra.mxu0 %v355
    %357 = vmatprep.subr.mxu0 0.0
    %358 = vmatpush2.msra.mxu0 0.0
    %359 = vmatprep.subr.mxu0 0.0
    %360 = vmatpush2.msra.mxu0 0.0
    %361 = vmatprep.subr.mxu0 0.0
    %362 = vmatpush2.msra.mxu0 0.0
    %363 = vmatprep.subr.mxu0 0.0
    %364 = vmatpush2.msra.mxu0 0.0
    %365 = vmatprep.subr.mxu0 0.0
    %366 = vmatpush2.msra.mxu0 0.0
    %367 = vmatprep.subr.mxu0 0.0
    %368 = vmatpush2.msra.mxu0 0.0
    %369 = vmatprep.subr.mxu0 0.0
    %370 = vmatpush2.msra.mxu0 0.0
    %371 = vmatprep.subr.mxu0 0.0
    %372 = vmatpush2.msra.mxu0 0.0
    %373 = vmatprep.subr.mxu0 0.0
    %374 = vmatpush2.msra.mxu0 0.0
    %375 = vmatprep.subr.mxu0 0.0
    %376 = vmatpush2.msra.mxu0 0.0
    %377 = vmatprep.subr.mxu0 0.0
    %378 = vmatpush2.msra.mxu0 0.0
    %379 = vmatprep.subr.mxu0 0.0
    %380 = vmatpush2.msra.mxu0 0.0
    %381 = vmatprep.subr.mxu0 0.0
    %382 = vmatpush2.msra.mxu0 0.0
    %383 = vmatprep.subr.mxu0 0.0
    %384 = vmatpush2.msra.mxu0 0.0
    %385 = vmatprep.subr.mxu0 0.0
    %386 = vmatpush2.msra.mxu0 0.0
    %387 = vmatprep.subr.mxu0 0.0
    %388 = vmatpush2.msra.mxu0 0.0
    %389 = vmatprep.mubr.f32.mxu0 0.0
    %v390 = vand.u32 %v34, 4294901760
    %v391 = vsub.f32 %v34, %v390
    %392 = vmatmul.mubr.f32.gmra.mxu0 %v391
    %v393 = vpop.f32.mrf.mxu0
    %v394 = vadd.f32 %v290, %v393
    %v395 = vpop.f32.mrf.mxu0
    %396 = vdwg.mxu0
    %397 = vmatprep.subr.mxu0 0.0
    %v398 = vand.u32 %v50, 4294901760
    %399 = vmatpush1.msra.mxu0 %v398
    %400 = vmatprep.subr.mxu0 0.0
    %v401 = vand.u32 %v49, 4294901760
    %402 = vmatpush1.msra.mxu0 %v401
    %403 = vmatprep.subr.mxu0 0.0
    %v404 = vand.u32 %v48, 4294901760
    %405 = vmatpush1.msra.mxu0 %v404
    %406 = vmatprep.subr.mxu0 0.0
    %v407 = vand.u32 %v47, 4294901760
    %408 = vmatpush1.msra.mxu0 %v407
    %409 = vmatprep.subr.mxu0 0.0
    %v410 = vand.u32 %v46, 4294901760
    %411 = vmatpush1.msra.mxu0 %v410
    %412 = vmatprep.subr.mxu0 0.0
    %v413 = vand.u32 %v45, 4294901760
    %414 = vmatpush1.msra.mxu0 %v413
    %415 = vmatprep.subr.mxu0 0.0
    %v416 = vand.u32 %v44, 4294901760
    %417 = vmatpush1.msra.mxu0 %v416
    %418 = vmatprep.subr.mxu0 0.0
    %v419 = vand.u32 %v43, 4294901760
    %420 = vmatpush1.msra.mxu0 %v419
    %421 = vmatprep.subr.mxu0 0.0
    %v422 = vand.u32 %v42, 4294901760
    %423 = vmatpush1.msra.mxu0 %v422
    %424 = vmatprep.subr.mxu0 0.0
    %v425 = vand.u32 %v41, 4294901760
    %426 = vmatpush1.msra.mxu0 %v425
    %427 = vmatprep.subr.mxu0 0.0
    %v428 = vand.u32 %v40, 4294901760
    %429 = vmatpush1.msra.mxu0 %v428
    %430 = vmatprep.subr.mxu0 0.0
    %v431 = vand.u32 %v39, 4294901760
    %432 = vmatpush1.msra.mxu0 %v431
    %433 = vmatprep.subr.mxu0 0.0
    %v434 = vand.u32 %v38, 4294901760
    %435 = vmatpush1.msra.mxu0 %v434
    %436 = vmatprep.subr.mxu0 0.0
    %v437 = vand.u32 %v37, 4294901760
    %438 = vmatpush1.msra.mxu0 %v437
    %439 = vmatprep.subr.mxu0 0.0
    %v440 = vand.u32 %v36, 4294901760
    %441 = vmatpush1.msra.mxu0 %v440
    %442 = vmatprep.subr.mxu0 0.0
    %v443 = vand.u32 %v35, 4294901760
    %444 = vmatpush1.msra.mxu0 %v443
    %445 = vmatprep.subr.mxu0 0.0
    %446 = vmatpush2.msra.mxu0 0.0
    %447 = vmatprep.subr.mxu0 0.0
    %448 = vmatpush2.msra.mxu0 0.0
    %449 = vmatprep.subr.mxu0 0.0
    %450 = vmatpush2.msra.mxu0 0.0
    %451 = vmatprep.subr.mxu0 0.0
    %452 = vmatpush2.msra.mxu0 0.0
    %453 = vmatprep.subr.mxu0 0.0
    %454 = vmatpush2.msra.mxu0 0.0
    %455 = vmatprep.subr.mxu0 0.0
    %456 = vmatpush2.msra.mxu0 0.0
    %457 = vmatprep.subr.mxu0 0.0
    %458 = vmatpush2.msra.mxu0 0.0
    %459 = vmatprep.subr.mxu0 0.0
    %460 = vmatpush2.msra.mxu0 0.0
    %461 = vmatprep.subr.mxu0 0.0
    %462 = vmatpush2.msra.mxu0 0.0
    %463 = vmatprep.subr.mxu0 0.0
    %464 = vmatpush2.msra.mxu0 0.0
    %465 = vmatprep.subr.mxu0 0.0
    %466 = vmatpush2.msra.mxu0 0.0
    %467 = vmatprep.subr.mxu0 0.0
    %468 = vmatpush2.msra.mxu0 0.0
    %469 = vmatprep.subr.mxu0 0.0
    %470 = vmatpush2.msra.mxu0 0.0
    %471 = vmatprep.subr.mxu0 0.0
    %472 = vmatpush2.msra.mxu0 0.0
    %473 = vmatprep.subr.mxu0 0.0
    %474 = vmatpush2.msra.mxu0 0.0
    %475 = vmatprep.subr.mxu0 0.0
    %476 = vmatpush2.msra.mxu0 0.0
    %477 = vmatprep.mubr.f32.mxu0 0.0
    %v478 = vand.u32 %v34, 4294901760
    %v479 = vsub.f32 %v34, %v478
    %v480 = vand.u32 %v479, 4294901760
    %481 = vmatmul.mubr.f32.gmra.mxu0 %v480
    %v482 = vpop.f32.mrf.mxu0
    %v483 = vadd.f32 %v394, %v482
    %v484 = vpop.f32.mrf.mxu0
    %485 = vdwg.mxu0
    %486 = vmatprep.subr.mxu0 0.0
    %v487 = vand.u32 %v50, 4294901760
    %v488 = vsub.f32 %v50, %v487
    %v489 = vand.u32 %v488, 4294901760
    %490 = vmatpush1.msra.mxu0 %v489
    %491 = vmatprep.subr.mxu0 0.0
    %v492 = vand.u32 %v49, 4294901760
    %v493 = vsub.f32 %v49, %v492
    %v494 = vand.u32 %v493, 4294901760
    %495 = vmatpush1.msra.mxu0 %v494
    %496 = vmatprep.subr.mxu0 0.0
    %v497 = vand.u32 %v48, 4294901760
    %v498 = vsub.f32 %v48, %v497
    %v499 = vand.u32 %v498, 4294901760
    %500 = vmatpush1.msra.mxu0 %v499
    %501 = vmatprep.subr.mxu0 0.0
    %v502 = vand.u32 %v47, 4294901760
    %v503 = vsub.f32 %v47, %v502
    %v504 = vand.u32 %v503, 4294901760
    %505 = vmatpush1.msra.mxu0 %v504
    %506 = vmatprep.subr.mxu0 0.0
    %v507 = vand.u32 %v46, 4294901760
    %v508 = vsub.f32 %v46, %v507
    %v509 = vand.u32 %v508, 4294901760
    %510 = vmatpush1.msra.mxu0 %v509
    %511 = vmatprep.subr.mxu0 0.0
    %v512 = vand.u32 %v45, 4294901760
    %v513 = vsub.f32 %v45, %v512
    %v514 = vand.u32 %v513, 4294901760
    %515 = vmatpush1.msra.mxu0 %v514
    %516 = vmatprep.subr.mxu0 0.0
    %v517 = vand.u32 %v44, 4294901760
    %v518 = vsub.f32 %v44, %v517
    %v519 = vand.u32 %v518, 4294901760
    %520 = vmatpush1.msra.mxu0 %v519
    %521 = vmatprep.subr.mxu0 0.0
    %v522 = vand.u32 %v43, 4294901760
    %v523 = vsub.f32 %v43, %v522
    %v524 = vand.u32 %v523, 4294901760
    %525 = vmatpush1.msra.mxu0 %v524
    %526 = vmatprep.subr.mxu0 0.0
    %v527 = vand.u32 %v42, 4294901760
    %v528 = vsub.f32 %v42, %v527
    %v529 = vand.u32 %v528, 4294901760
    %530 = vmatpush1.msra.mxu0 %v529
    %531 = vmatprep.subr.mxu0 0.0
    %v532 = vand.u32 %v41, 4294901760
    %v533 = vsub.f32 %v41, %v532
    %v534 = vand.u32 %v533, 4294901760
    %535 = vmatpush1.msra.mxu0 %v534
    %536 = vmatprep.subr.mxu0 0.0
    %v537 = vand.u32 %v40, 4294901760
    %v538 = vsub.f32 %v40, %v537
    %v539 = vand.u32 %v538, 4294901760
    %540 = vmatpush1.msra.mxu0 %v539
    %541 = vmatprep.subr.mxu0 0.0
    %v542 = vand.u32 %v39, 4294901760
    %v543 = vsub.f32 %v39, %v542
    %v544 = vand.u32 %v543, 4294901760
    %545 = vmatpush1.msra.mxu0 %v544
    %546 = vmatprep.subr.mxu0 0.0
    %v547 = vand.u32 %v38, 4294901760
    %v548 = vsub.f32 %v38, %v547
    %v549 = vand.u32 %v548, 4294901760
    %550 = vmatpush1.msra.mxu0 %v549
    %551 = vmatprep.subr.mxu0 0.0
    %v552 = vand.u32 %v37, 4294901760
    %v553 = vsub.f32 %v37, %v552
    %v554 = vand.u32 %v553, 4294901760
    %555 = vmatpush1.msra.mxu0 %v554
    %556 = vmatprep.subr.mxu0 0.0
    %v557 = vand.u32 %v36, 4294901760
    %v558 = vsub.f32 %v36, %v557
    %v559 = vand.u32 %v558, 4294901760
    %560 = vmatpush1.msra.mxu0 %v559
    %561 = vmatprep.subr.mxu0 0.0
    %v562 = vand.u32 %v35, 4294901760
    %v563 = vsub.f32 %v35, %v562
    %v564 = vand.u32 %v563, 4294901760
    %565 = vmatpush1.msra.mxu0 %v564
    %566 = vmatprep.subr.mxu0 0.0
    %567 = vmatpush2.msra.mxu0 0.0
    %568 = vmatprep.subr.mxu0 0.0
    %569 = vmatpush2.msra.mxu0 0.0
    %570 = vmatprep.subr.mxu0 0.0
    %571 = vmatpush2.msra.mxu0 0.0
    %572 = vmatprep.subr.mxu0 0.0
    %573 = vmatpush2.msra.mxu0 0.0
    %574 = vmatprep.subr.mxu0 0.0
    %575 = vmatpush2.msra.mxu0 0.0
    %576 = vmatprep.subr.mxu0 0.0
    %577 = vmatpush2.msra.mxu0 0.0
    %578 = vmatprep.subr.mxu0 0.0
    %579 = vmatpush2.msra.mxu0 0.0
    %580 = vmatprep.subr.mxu0 0.0
    %581 = vmatpush2.msra.mxu0 0.0
    %582 = vmatprep.subr.mxu0 0.0
    %583 = vmatpush2.msra.mxu0 0.0
    %584 = vmatprep.subr.mxu0 0.0
    %585 = vmatpush2.msra.mxu0 0.0
    %586 = vmatprep.subr.mxu0 0.0
    %587 = vmatpush2.msra.mxu0 0.0
    %588 = vmatprep.subr.mxu0 0.0
    %589 = vmatpush2.msra.mxu0 0.0
    %590 = vmatprep.subr.mxu0 0.0
    %591 = vmatpush2.msra.mxu0 0.0
    %592 = vmatprep.subr.mxu0 0.0
    %593 = vmatpush2.msra.mxu0 0.0
    %594 = vmatprep.subr.mxu0 0.0
    %595 = vmatpush2.msra.mxu0 0.0
    %596 = vmatprep.subr.mxu0 0.0
    %597 = vmatpush2.msra.mxu0 0.0
    %598 = vmatprep.mubr.f32.mxu0 0.0
    %v599 = vand.u32 %v34, 4294901760
    %600 = vmatmul.mubr.f32.gmra.mxu0 %v599
    %v601 = vpop.f32.mrf.mxu0
    %v602 = vadd.f32 %v483, %v601
    %v603 = vpop.f32.mrf.mxu0
    %604 = vdwg.mxu0
    %605 = vmatprep.subr.mxu0 0.0
    %v606 = vand.u32 %v50, 4294901760
    %607 = vmatpush1.msra.mxu0 %v606
    %608 = vmatprep.subr.mxu0 0.0
    %v609 = vand.u32 %v49, 4294901760
    %610 = vmatpush1.msra.mxu0 %v609
    %611 = vmatprep.subr.mxu0 0.0
    %v612 = vand.u32 %v48, 4294901760
    %613 = vmatpush1.msra.mxu0 %v612
    %614 = vmatprep.subr.mxu0 0.0
    %v615 = vand.u32 %v47, 4294901760
    %616 = vmatpush1.msra.mxu0 %v615
    %617 = vmatprep.subr.mxu0 0.0
    %v618 = vand.u32 %v46, 4294901760
    %619 = vmatpush1.msra.mxu0 %v618
    %620 = vmatprep.subr.mxu0 0.0
    %v621 = vand.u32 %v45, 4294901760
    %622 = vmatpush1.msra.mxu0 %v621
    %623 = vmatprep.subr.mxu0 0.0
    %v624 = vand.u32 %v44, 4294901760
    %625 = vmatpush1.msra.mxu0 %v624
    %626 = vmatprep.subr.mxu0 0.0
    %v627 = vand.u32 %v43, 4294901760
    %628 = vmatpush1.msra.mxu0 %v627
    %629 = vmatprep.subr.mxu0 0.0
    %v630 = vand.u32 %v42, 4294901760
    %631 = vmatpush1.msra.mxu0 %v630
    %632 = vmatprep.subr.mxu0 0.0
    %v633 = vand.u32 %v41, 4294901760
    %634 = vmatpush1.msra.mxu0 %v633
    %635 = vmatprep.subr.mxu0 0.0
    %v636 = vand.u32 %v40, 4294901760
    %637 = vmatpush1.msra.mxu0 %v636
    %638 = vmatprep.subr.mxu0 0.0
    %v639 = vand.u32 %v39, 4294901760
    %640 = vmatpush1.msra.mxu0 %v639
    %641 = vmatprep.subr.mxu0 0.0
    %v642 = vand.u32 %v38, 4294901760
    %643 = vmatpush1.msra.mxu0 %v642
    %644 = vmatprep.subr.mxu0 0.0
    %v645 = vand.u32 %v37, 4294901760
    %646 = vmatpush1.msra.mxu0 %v645
    %647 = vmatprep.subr.mxu0 0.0
    %v648 = vand.u32 %v36, 4294901760
    %649 = vmatpush1.msra.mxu0 %v648
    %650 = vmatprep.subr.mxu0 0.0
    %v651 = vand.u32 %v35, 4294901760
    %652 = vmatpush1.msra.mxu0 %v651
    %653 = vmatprep.subr.mxu0 0.0
    %654 = vmatpush2.msra.mxu0 0.0
    %655 = vmatprep.subr.mxu0 0.0
    %656 = vmatpush2.msra.mxu0 0.0
    %657 = vmatprep.subr.mxu0 0.0
    %658 = vmatpush2.msra.mxu0 0.0
    %659 = vmatprep.subr.mxu0 0.0
    %660 = vmatpush2.msra.mxu0 0.0
    %661 = vmatprep.subr.mxu0 0.0
    %662 = vmatpush2.msra.mxu0 0.0
    %663 = vmatprep.subr.mxu0 0.0
    %664 = vmatpush2.msra.mxu0 0.0
    %665 = vmatprep.subr.mxu0 0.0
    %666 = vmatpush2.msra.mxu0 0.0
    %667 = vmatprep.subr.mxu0 0.0
    %668 = vmatpush2.msra.mxu0 0.0
    %669 = vmatprep.subr.mxu0 0.0
    %670 = vmatpush2.msra.mxu0 0.0
    %671 = vmatprep.subr.mxu0 0.0
    %672 = vmatpush2.msra.mxu0 0.0
    %673 = vmatprep.subr.mxu0 0.0
    %674 = vmatpush2.msra.mxu0 0.0
    %675 = vmatprep.subr.mxu0 0.0
    %676 = vmatpush2.msra.mxu0 0.0
    %677 = vmatprep.subr.mxu0 0.0
    %678 = vmatpush2.msra.mxu0 0.0
    %679 = vmatprep.subr.mxu0 0.0
    %680 = vmatpush2.msra.mxu0 0.0
    %681 = vmatprep.subr.mxu0 0.0
    %682 = vmatpush2.msra.mxu0 0.0
    %683 = vmatprep.subr.mxu0 0.0
    %684 = vmatpush2.msra.mxu0 0.0
    %685 = vmatprep.mubr.f32.mxu0 0.0
    %v686 = vand.u32 %v34, 4294901760
    %687 = vmatmul.mubr.f32.gmra.mxu0 %v686
    %v688 = vpop.f32.mrf.mxu0
    %v689 = vadd.f32 %v602, %v688
    %v690 = vpop.f32.mrf.mxu0
    %691 = vdwg.mxu0
    %v692 = vtanh.pop %v689
    %693 = vst [vmem:[#allocation2] sm:$0x1] %v692
    %694 = vst [vmem:[%s2] sm:$0x1] %v692
    %v695 = vld [vmem:[#allocation3 + $0x80] sm:$0xff]
    %v696 = vld [vmem:[#allocation3 + $0x88] sm:$0xff]
    %v697 = vld [vmem:[#allocation3 + $0x90] sm:$0xff]
    %v698 = vld [vmem:[#allocation3 + $0x98] sm:$0xff]
    %v699 = vld [vmem:[#allocation3 + $0xa0] sm:$0xff]
    %v700 = vld [vmem:[#allocation3 + $0xa8] sm:$0xff]
    %v701 = vld [vmem:[#allocation3 + $0xb0] sm:$0xff]
    %v702 = vld [vmem:[#allocation3 + $0xb8] sm:$0xff]
    %v703 = vld [vmem:[#allocation3 + $0xc0] sm:$0xff]
    %v704 = vld [vmem:[#allocation3 + $0xc8] sm:$0xff]
    %v705 = vld [vmem:[#allocation3 + $0xd0] sm:$0xff]
    %v706 = vld [vmem:[#allocation3 + $0xd8] sm:$0xff]
    %v707 = vld [vmem:[#allocation3 + $0xe0] sm:$0xff]
    %v708 = vld [vmem:[#allocation3 + $0xe8] sm:$0xff]
    %v709 = vld [vmem:[#allocation3 + $0xf0] sm:$0xff]
    %v710 = vld [vmem:[#allocation3 + $0xf8] sm:$0xff]
    %v711 = vld [vmem:[#allocation3 + $0x100] sm:$0x1]
    %712 = vmatprep.subr.mxu0 0.0
    %v713 = vand.u32 %v710, 4294901760
    %714 = vmatpush1.msra.mxu0 %v713
    %715 = vmatprep.subr.mxu0 0.0
    %v716 = vand.u32 %v709, 4294901760
    %717 = vmatpush1.msra.mxu0 %v716
    %718 = vmatprep.subr.mxu0 0.0
    %v719 = vand.u32 %v708, 4294901760
    %720 = vmatpush1.msra.mxu0 %v719
    %721 = vmatprep.subr.mxu0 0.0
    %v722 = vand.u32 %v707, 4294901760
    %723 = vmatpush1.msra.mxu0 %v722
    %724 = vmatprep.subr.mxu0 0.0
    %v725 = vand.u32 %v706, 4294901760
    %726 = vmatpush1.msra.mxu0 %v725
    %727 = vmatprep.subr.mxu0 0.0
    %v728 = vand.u32 %v705, 4294901760
    %729 = vmatpush1.msra.mxu0 %v728
    %730 = vmatprep.subr.mxu0 0.0
    %v731 = vand.u32 %v704, 4294901760
    %732 = vmatpush1.msra.mxu0 %v731
    %733 = vmatprep.subr.mxu0 0.0
    %v734 = vand.u32 %v703, 4294901760
    %735 = vmatpush1.msra.mxu0 %v734
    %736 = vmatprep.subr.mxu0 0.0
    %v737 = vand.u32 %v702, 4294901760
    %738 = vmatpush1.msra.mxu0 %v737
    %739 = vmatprep.subr.mxu0 0.0
    %v740 = vand.u32 %v701, 4294901760
    %741 = vmatpush1.msra.mxu0 %v740
    %742 = vmatprep.subr.mxu0 0.0
    %v743 = vand.u32 %v700, 4294901760
    %744 = vmatpush1.msra.mxu0 %v743
    %745 = vmatprep.subr.mxu0 0.0
    %v746 = vand.u32 %v699, 4294901760
    %747 = vmatpush1.msra.mxu0 %v746
    %748 = vmatprep.subr.mxu0 0.0
    %v749 = vand.u32 %v698, 4294901760
    %750 = vmatpush1.msra.mxu0 %v749
    %751 = vmatprep.subr.mxu0 0.0
    %v752 = vand.u32 %v697, 4294901760
    %753 = vmatpush1.msra.mxu0 %v752
    %754 = vmatprep.subr.mxu0 0.0
    %v755 = vand.u32 %v696, 4294901760
    %756 = vmatpush1.msra.mxu0 %v755
    %757 = vmatprep.subr.mxu0 0.0
    %v758 = vand.u32 %v695, 4294901760
    %759 = vmatpush1.msra.mxu0 %v758
    %760 = vmatprep.subr.mxu0 0.0
    %761 = vmatpush2.msra.mxu0 0.0
    %762 = vmatprep.subr.mxu0 0.0
    %763 = vmatpush2.msra.mxu0 0.0
    %764 = vmatprep.subr.mxu0 0.0
    %765 = vmatpush2.msra.mxu0 0.0
    %766 = vmatprep.subr.mxu0 0.0
    %767 = vmatpush2.msra.mxu0 0.0
    %768 = vmatprep.subr.mxu0 0.0
    %769 = vmatpush2.msra.mxu0 0.0
    %770 = vmatprep.subr.mxu0 0.0
    %771 = vmatpush2.msra.mxu0 0.0
    %772 = vmatprep.subr.mxu0 0.0
    %773 = vmatpush2.msra.mxu0 0.0
    %774 = vmatprep.subr.mxu0 0.0
    %775 = vmatpush2.msra.mxu0 0.0
    %776 = vmatprep.subr.mxu0 0.0
    %777 = vmatpush2.msra.mxu0 0.0
    %778 = vmatprep.subr.mxu0 0.0
    %779 = vmatpush2.msra.mxu0 0.0
    %780 = vmatprep.subr.mxu0 0.0
    %781 = vmatpush2.msra.mxu0 0.0
    %782 = vmatprep.subr.mxu0 0.0
    %783 = vmatpush2.msra.mxu0 0.0
    %784 = vmatprep.subr.mxu0 0.0
    %785 = vmatpush2.msra.mxu0 0.0
    %786 = vmatprep.subr.mxu0 0.0
    %787 = vmatpush2.msra.mxu0 0.0
    %788 = vmatprep.subr.mxu0 0.0
    %789 = vmatpush2.msra.mxu0 0.0
    %790 = vmatprep.subr.mxu0 0.0
    %791 = vmatpush2.msra.mxu0 0.0
    %792 = vmatprep.mubr.f32.mxu0 0.0
    %v793 = vand.u32 %v692, 4294901760
    %v794 = vsub.f32 %v692, %v793
    %v795 = vand.u32 %v794, 4294901760
    %v796 = vsub.f32 %v794, %v795
    %v797 = vand.u32 %v796, 4294901760
    %798 = vmatmul.mubr.f32.gmra.mxu0 %v797
    %v799 = vpop.f32.mrf.mxu0
    %v800 = vadd.f32 %v711, %v799
    %v801 = vpop.f32.mrf.mxu0
    %802 = vdwg.mxu0
    %803 = vmatprep.subr.mxu0 0.0
    %v804 = vand.u32 %v710, 4294901760
    %v805 = vsub.f32 %v710, %v804
    %v806 = vand.u32 %v805, 4294901760
    %v807 = vsub.f32 %v805, %v806
    %v808 = vand.u32 %v807, 4294901760
    %809 = vmatpush1.msra.mxu0 %v808
    %810 = vmatprep.subr.mxu0 0.0
    %v811 = vand.u32 %v709, 4294901760
    %v812 = vsub.f32 %v709, %v811
    %v813 = vand.u32 %v812, 4294901760
    %v814 = vsub.f32 %v812, %v813
    %v815 = vand.u32 %v814, 4294901760
    %816 = vmatpush1.msra.mxu0 %v815
    %817 = vmatprep.subr.mxu0 0.0
    %v818 = vand.u32 %v708, 4294901760
    %v819 = vsub.f32 %v708, %v818
    %v820 = vand.u32 %v819, 4294901760
    %v821 = vsub.f32 %v819, %v820
    %v822 = vand.u32 %v821, 4294901760
    %823 = vmatpush1.msra.mxu0 %v822
    %824 = vmatprep.subr.mxu0 0.0
    %v825 = vand.u32 %v707, 4294901760
    %v826 = vsub.f32 %v707, %v825
    %v827 = vand.u32 %v826, 4294901760
    %v828 = vsub.f32 %v826, %v827
    %v829 = vand.u32 %v828, 4294901760
    %830 = vmatpush1.msra.mxu0 %v829
    %831 = vmatprep.subr.mxu0 0.0
    %v832 = vand.u32 %v706, 4294901760
    %v833 = vsub.f32 %v706, %v832
    %v834 = vand.u32 %v833, 4294901760
    %v835 = vsub.f32 %v833, %v834
    %v836 = vand.u32 %v835, 4294901760
    %837 = vmatpush1.msra.mxu0 %v836
    %838 = vmatprep.subr.mxu0 0.0
    %v839 = vand.u32 %v705, 4294901760
    %v840 = vsub.f32 %v705, %v839
    %v841 = vand.u32 %v840, 4294901760
    %v842 = vsub.f32 %v840, %v841
    %v843 = vand.u32 %v842, 4294901760
    %844 = vmatpush1.msra.mxu0 %v843
    %845 = vmatprep.subr.mxu0 0.0
    %v846 = vand.u32 %v704, 4294901760
    %v847 = vsub.f32 %v704, %v846
    %v848 = vand.u32 %v847, 4294901760
    %v849 = vsub.f32 %v847, %v848
    %v850 = vand.u32 %v849, 4294901760
    %851 = vmatpush1.msra.mxu0 %v850
    %852 = vmatprep.subr.mxu0 0.0
    %v853 = vand.u32 %v703, 4294901760
    %v854 = vsub.f32 %v703, %v853
    %v855 = vand.u32 %v854, 4294901760
    %v856 = vsub.f32 %v854, %v855
    %v857 = vand.u32 %v856, 4294901760
    %858 = vmatpush1.msra.mxu0 %v857
    %859 = vmatprep.subr.mxu0 0.0
    %v860 = vand.u32 %v702, 4294901760
    %v861 = vsub.f32 %v702, %v860
    %v862 = vand.u32 %v861, 4294901760
    %v863 = vsub.f32 %v861, %v862
    %v864 = vand.u32 %v863, 4294901760
    %865 = vmatpush1.msra.mxu0 %v864
    %866 = vmatprep.subr.mxu0 0.0
    %v867 = vand.u32 %v701, 4294901760
    %v868 = vsub.f32 %v701, %v867
    %v869 = vand.u32 %v868, 4294901760
    %v870 = vsub.f32 %v868, %v869
    %v871 = vand.u32 %v870, 4294901760
    %872 = vmatpush1.msra.mxu0 %v871
    %873 = vmatprep.subr.mxu0 0.0
    %v874 = vand.u32 %v700, 4294901760
    %v875 = vsub.f32 %v700, %v874
    %v876 = vand.u32 %v875, 4294901760
    %v877 = vsub.f32 %v875, %v876
    %v878 = vand.u32 %v877, 4294901760
    %879 = vmatpush1.msra.mxu0 %v878
    %880 = vmatprep.subr.mxu0 0.0
    %v881 = vand.u32 %v699, 4294901760
    %v882 = vsub.f32 %v699, %v881
    %v883 = vand.u32 %v882, 4294901760
    %v884 = vsub.f32 %v882, %v883
    %v885 = vand.u32 %v884, 4294901760
    %886 = vmatpush1.msra.mxu0 %v885
    %887 = vmatprep.subr.mxu0 0.0
    %v888 = vand.u32 %v698, 4294901760
    %v889 = vsub.f32 %v698, %v888
    %v890 = vand.u32 %v889, 4294901760
    %v891 = vsub.f32 %v889, %v890
    %v892 = vand.u32 %v891, 4294901760
    %893 = vmatpush1.msra.mxu0 %v892
    %894 = vmatprep.subr.mxu0 0.0
    %v895 = vand.u32 %v697, 4294901760
    %v896 = vsub.f32 %v697, %v895
    %v897 = vand.u32 %v896, 4294901760
    %v898 = vsub.f32 %v896, %v897
    %v899 = vand.u32 %v898, 4294901760
    %900 = vmatpush1.msra.mxu0 %v899
    %901 = vmatprep.subr.mxu0 0.0
    %v902 = vand.u32 %v696, 4294901760
    %v903 = vsub.f32 %v696, %v902
    %v904 = vand.u32 %v903, 4294901760
    %v905 = vsub.f32 %v903, %v904
    %v906 = vand.u32 %v905, 4294901760
    %907 = vmatpush1.msra.mxu0 %v906
    %908 = vmatprep.subr.mxu0 0.0
    %v909 = vand.u32 %v695, 4294901760
    %v910 = vsub.f32 %v695, %v909
    %v911 = vand.u32 %v910, 4294901760
    %v912 = vsub.f32 %v910, %v911
    %v913 = vand.u32 %v912, 4294901760
    %914 = vmatpush1.msra.mxu0 %v913
    %915 = vmatprep.subr.mxu0 0.0
    %916 = vmatpush2.msra.mxu0 0.0
    %917 = vmatprep.subr.mxu0 0.0
    %918 = vmatpush2.msra.mxu0 0.0
    %919 = vmatprep.subr.mxu0 0.0
    %920 = vmatpush2.msra.mxu0 0.0
    %921 = vmatprep.subr.mxu0 0.0
    %922 = vmatpush2.msra.mxu0 0.0
    %923 = vmatprep.subr.mxu0 0.0
    %924 = vmatpush2.msra.mxu0 0.0
    %925 = vmatprep.subr.mxu0 0.0
    %926 = vmatpush2.msra.mxu0 0.0
    %927 = vmatprep.subr.mxu0 0.0
    %928 = vmatpush2.msra.mxu0 0.0
    %929 = vmatprep.subr.mxu0 0.0
    %930 = vmatpush2.msra.mxu0 0.0
    %931 = vmatprep.subr.mxu0 0.0
    %932 = vmatpush2.msra.mxu0 0.0
    %933 = vmatprep.subr.mxu0 0.0
    %934 = vmatpush2.msra.mxu0 0.0
    %935 = vmatprep.subr.mxu0 0.0
    %936 = vmatpush2.msra.mxu0 0.0
    %937 = vmatprep.subr.mxu0 0.0
    %938 = vmatpush2.msra.mxu0 0.0
    %939 = vmatprep.subr.mxu0 0.0
    %940 = vmatpush2.msra.mxu0 0.0
    %941 = vmatprep.subr.mxu0 0.0
    %942 = vmatpush2.msra.mxu0 0.0
    %943 = vmatprep.subr.mxu0 0.0
    %944 = vmatpush2.msra.mxu0 0.0
    %945 = vmatprep.subr.mxu0 0.0
    %946 = vmatpush2.msra.mxu0 0.0
    %947 = vmatprep.mubr.f32.mxu0 0.0
    %v948 = vand.u32 %v692, 4294901760
    %949 = vmatmul.mubr.f32.gmra.mxu0 %v948
    %v950 = vpop.f32.mrf.mxu0
    %v951 = vadd.f32 %v800, %v950
    %v952 = vpop.f32.mrf.mxu0
    %953 = vdwg.mxu0
    %954 = vmatprep.subr.mxu0 0.0
    %v955 = vand.u32 %v710, 4294901760
    %v956 = vsub.f32 %v710, %v955
    %957 = vmatpush1.msra.mxu0 %v956
    %958 = vmatprep.subr.mxu0 0.0
    %v959 = vand.u32 %v709, 4294901760
    %v960 = vsub.f32 %v709, %v959
    %961 = vmatpush1.msra.mxu0 %v960
    %962 = vmatprep.subr.mxu0 0.0
    %v963 = vand.u32 %v708, 4294901760
    %v964 = vsub.f32 %v708, %v963
    %965 = vmatpush1.msra.mxu0 %v964
    %966 = vmatprep.subr.mxu0 0.0
    %v967 = vand.u32 %v707, 4294901760
    %v968 = vsub.f32 %v707, %v967
    %969 = vmatpush1.msra.mxu0 %v968
    %970 = vmatprep.subr.mxu0 0.0
    %v971 = vand.u32 %v706, 4294901760
    %v972 = vsub.f32 %v706, %v971
    %973 = vmatpush1.msra.mxu0 %v972
    %974 = vmatprep.subr.mxu0 0.0
    %v975 = vand.u32 %v705, 4294901760
    %v976 = vsub.f32 %v705, %v975
    %977 = vmatpush1.msra.mxu0 %v976
    %978 = vmatprep.subr.mxu0 0.0
    %v979 = vand.u32 %v704, 4294901760
    %v980 = vsub.f32 %v704, %v979
    %981 = vmatpush1.msra.mxu0 %v980
    %982 = vmatprep.subr.mxu0 0.0
    %v983 = vand.u32 %v703, 4294901760
    %v984 = vsub.f32 %v703, %v983
    %985 = vmatpush1.msra.mxu0 %v984
    %986 = vmatprep.subr.mxu0 0.0
    %v987 = vand.u32 %v702, 4294901760
    %v988 = vsub.f32 %v702, %v987
    %989 = vmatpush1.msra.mxu0 %v988
    %990 = vmatprep.subr.mxu0 0.0
    %v991 = vand.u32 %v701, 4294901760
    %v992 = vsub.f32 %v701, %v991
    %993 = vmatpush1.msra.mxu0 %v992
    %994 = vmatprep.subr.mxu0 0.0
    %v995 = vand.u32 %v700, 4294901760
    %v996 = vsub.f32 %v700, %v995
    %997 = vmatpush1.msra.mxu0 %v996
    %998 = vmatprep.subr.mxu0 0.0
    %v999 = vand.u32 %v699, 4294901760
    %v1000 = vsub.f32 %v699, %v999
    %1001 = vmatpush1.msra.mxu0 %v1000
    %1002 = vmatprep.subr.mxu0 0.0
    %v1003 = vand.u32 %v698, 4294901760
    %v1004 = vsub.f32 %v698, %v1003
    %1005 = vmatpush1.msra.mxu0 %v1004
    %1006 = vmatprep.subr.mxu0 0.0
    %v1007 = vand.u32 %v697, 4294901760
    %v1008 = vsub.f32 %v697, %v1007
    %1009 = vmatpush1.msra.mxu0 %v1008
    %1010 = vmatprep.subr.mxu0 0.0
    %v1011 = vand.u32 %v696, 4294901760
    %v1012 = vsub.f32 %v696, %v1011
    %1013 = vmatpush1.msra.mxu0 %v1012
    %1014 = vmatprep.subr.mxu0 0.0
    %v1015 = vand.u32 %v695, 4294901760
    %v1016 = vsub.f32 %v695, %v1015
    %1017 = vmatpush1.msra.mxu0 %v1016
    %1018 = vmatprep.subr.mxu0 0.0
    %1019 = vmatpush2.msra.mxu0 0.0
    %1020 = vmatprep.subr.mxu0 0.0
    %1021 = vmatpush2.msra.mxu0 0.0
    %1022 = vmatprep.subr.mxu0 0.0
    %1023 = vmatpush2.msra.mxu0 0.0
    %1024 = vmatprep.subr.mxu0 0.0
    %1025 = vmatpush2.msra.mxu0 0.0
    %1026 = vmatprep.subr.mxu0 0.0
    %1027 = vmatpush2.msra.mxu0 0.0
    %1028 = vmatprep.subr.mxu0 0.0
    %1029 = vmatpush2.msra.mxu0 0.0
    %1030 = vmatprep.subr.mxu0 0.0
    %1031 = vmatpush2.msra.mxu0 0.0
    %1032 = vmatprep.subr.mxu0 0.0
    %1033 = vmatpush2.msra.mxu0 0.0
    %1034 = vmatprep.subr.mxu0 0.0
    %1035 = vmatpush2.msra.mxu0 0.0
    %1036 = vmatprep.subr.mxu0 0.0
    %1037 = vmatpush2.msra.mxu0 0.0
    %1038 = vmatprep.subr.mxu0 0.0
    %1039 = vmatpush2.msra.mxu0 0.0
    %1040 = vmatprep.subr.mxu0 0.0
    %1041 = vmatpush2.msra.mxu0 0.0
    %1042 = vmatprep.subr.mxu0 0.0
    %1043 = vmatpush2.msra.mxu0 0.0
    %1044 = vmatprep.subr.mxu0 0.0
    %1045 = vmatpush2.msra.mxu0 0.0
    %1046 = vmatprep.subr.mxu0 0.0
    %1047 = vmatpush2.msra.mxu0 0.0
    %1048 = vmatprep.subr.mxu0 0.0
    %1049 = vmatpush2.msra.mxu0 0.0
    %1050 = vmatprep.mubr.f32.mxu0 0.0
    %v1051 = vand.u32 %v692, 4294901760
    %v1052 = vsub.f32 %v692, %v1051
    %1053 = vmatmul.mubr.f32.gmra.mxu0 %v1052
    %v1054 = vpop.f32.mrf.mxu0
    %v1055 = vadd.f32 %v951, %v1054
    %v1056 = vpop.f32.mrf.mxu0
    %1057 = vdwg.mxu0
    %1058 = vmatprep.subr.mxu0 0.0
    %v1059 = vand.u32 %v710, 4294901760
    %1060 = vmatpush1.msra.mxu0 %v1059
    %1061 = vmatprep.subr.mxu0 0.0
    %v1062 = vand.u32 %v709, 4294901760
    %1063 = vmatpush1.msra.mxu0 %v1062
    %1064 = vmatprep.subr.mxu0 0.0
    %v1065 = vand.u32 %v708, 4294901760
    %1066 = vmatpush1.msra.mxu0 %v1065
    %1067 = vmatprep.subr.mxu0 0.0
    %v1068 = vand.u32 %v707, 4294901760
    %1069 = vmatpush1.msra.mxu0 %v1068
    %1070 = vmatprep.subr.mxu0 0.0
    %v1071 = vand.u32 %v706, 4294901760
    %1072 = vmatpush1.msra.mxu0 %v1071
    %1073 = vmatprep.subr.mxu0 0.0
    %v1074 = vand.u32 %v705, 4294901760
    %1075 = vmatpush1.msra.mxu0 %v1074
    %1076 = vmatprep.subr.mxu0 0.0
    %v1077 = vand.u32 %v704, 4294901760
    %1078 = vmatpush1.msra.mxu0 %v1077
    %1079 = vmatprep.subr.mxu0 0.0
    %v1080 = vand.u32 %v703, 4294901760
    %1081 = vmatpush1.msra.mxu0 %v1080
    %1082 = vmatprep.subr.mxu0 0.0
    %v1083 = vand.u32 %v702, 4294901760
    %1084 = vmatpush1.msra.mxu0 %v1083
    %1085 = vmatprep.subr.mxu0 0.0
    %v1086 = vand.u32 %v701, 4294901760
    %1087 = vmatpush1.msra.mxu0 %v1086
    %1088 = vmatprep.subr.mxu0 0.0
    %v1089 = vand.u32 %v700, 4294901760
    %1090 = vmatpush1.msra.mxu0 %v1089
    %1091 = vmatprep.subr.mxu0 0.0
    %v1092 = vand.u32 %v699, 4294901760
    %1093 = vmatpush1.msra.mxu0 %v1092
    %1094 = vmatprep.subr.mxu0 0.0
    %v1095 = vand.u32 %v698, 4294901760
    %1096 = vmatpush1.msra.mxu0 %v1095
    %1097 = vmatprep.subr.mxu0 0.0
    %v1098 = vand.u32 %v697, 4294901760
    %1099 = vmatpush1.msra.mxu0 %v1098
    %1100 = vmatprep.subr.mxu0 0.0
    %v1101 = vand.u32 %v696, 4294901760
    %1102 = vmatpush1.msra.mxu0 %v1101
    %1103 = vmatprep.subr.mxu0 0.0
    %v1104 = vand.u32 %v695, 4294901760
    %1105 = vmatpush1.msra.mxu0 %v1104
    %1106 = vmatprep.subr.mxu0 0.0
    %1107 = vmatpush2.msra.mxu0 0.0
    %1108 = vmatprep.subr.mxu0 0.0
    %1109 = vmatpush2.msra.mxu0 0.0
    %1110 = vmatprep.subr.mxu0 0.0
    %1111 = vmatpush2.msra.mxu0 0.0
    %1112 = vmatprep.subr.mxu0 0.0
    %1113 = vmatpush2.msra.mxu0 0.0
    %1114 = vmatprep.subr.mxu0 0.0
    %1115 = vmatpush2.msra.mxu0 0.0
    %1116 = vmatprep.subr.mxu0 0.0
    %1117 = vmatpush2.msra.mxu0 0.0
    %1118 = vmatprep.subr.mxu0 0.0
    %1119 = vmatpush2.msra.mxu0 0.0
    %1120 = vmatprep.subr.mxu0 0.0
    %1121 = vmatpush2.msra.mxu0 0.0
    %1122 = vmatprep.subr.mxu0 0.0
    %1123 = vmatpush2.msra.mxu0 0.0
    %1124 = vmatprep.subr.mxu0 0.0
    %1125 = vmatpush2.msra.mxu0 0.0
    %1126 = vmatprep.subr.mxu0 0.0
    %1127 = vmatpush2.msra.mxu0 0.0
    %1128 = vmatprep.subr.mxu0 0.0
    %1129 = vmatpush2.msra.mxu0 0.0
    %1130 = vmatprep.subr.mxu0 0.0
    %1131 = vmatpush2.msra.mxu0 0.0
    %1132 = vmatprep.subr.mxu0 0.0
    %1133 = vmatpush2.msra.mxu0 0.0
    %1134 = vmatprep.subr.mxu0 0.0
    %1135 = vmatpush2.msra.mxu0 0.0
    %1136 = vmatprep.subr.mxu0 0.0
    %1137 = vmatpush2.msra.mxu0 0.0
    %1138 = vmatprep.mubr.f32.mxu0 0.0
    %v1139 = vand.u32 %v692, 4294901760
    %v1140 = vsub.f32 %v692, %v1139
    %v1141 = vand.u32 %v1140, 4294901760
    %1142 = vmatmul.mubr.f32.gmra.mxu0 %v1141
    %v1143 = vpop.f32.mrf.mxu0
    %v1144 = vadd.f32 %v1055, %v1143
    %v1145 = vpop.f32.mrf.mxu0
    %1146 = vdwg.mxu0
    %1147 = vmatprep.subr.mxu0 0.0
    %v1148 = vand.u32 %v710, 4294901760
    %v1149 = vsub.f32 %v710, %v1148
    %v1150 = vand.u32 %v1149, 4294901760
    %1151 = vmatpush1.msra.mxu0 %v1150
    %1152 = vmatprep.subr.mxu0 0.0
    %v1153 = vand.u32 %v709, 4294901760
    %v1154 = vsub.f32 %v709, %v1153
    %v1155 = vand.u32 %v1154, 4294901760
    %1156 = vmatpush1.msra.mxu0 %v1155
    %1157 = vmatprep.subr.mxu0 0.0
    %v1158 = vand.u32 %v708, 4294901760
    %v1159 = vsub.f32 %v708, %v1158
    %v1160 = vand.u32 %v1159, 4294901760
    %1161 = vmatpush1.msra.mxu0 %v1160
    %1162 = vmatprep.subr.mxu0 0.0
    %v1163 = vand.u32 %v707, 4294901760
    %v1164 = vsub.f32 %v707, %v1163
    %v1165 = vand.u32 %v1164, 4294901760
    %1166 = vmatpush1.msra.mxu0 %v1165
    %1167 = vmatprep.subr.mxu0 0.0
    %v1168 = vand.u32 %v706, 4294901760
    %v1169 = vsub.f32 %v706, %v1168
    %v1170 = vand.u32 %v1169, 4294901760
    %1171 = vmatpush1.msra.mxu0 %v1170
    %1172 = vmatprep.subr.mxu0 0.0
    %v1173 = vand.u32 %v705, 4294901760
    %v1174 = vsub.f32 %v705, %v1173
    %v1175 = vand.u32 %v1174, 4294901760
    %1176 = vmatpush1.msra.mxu0 %v1175
    %1177 = vmatprep.subr.mxu0 0.0
    %v1178 = vand.u32 %v704, 4294901760
    %v1179 = vsub.f32 %v704, %v1178
    %v1180 = vand.u32 %v1179, 4294901760
    %1181 = vmatpush1.msra.mxu0 %v1180
    %1182 = vmatprep.subr.mxu0 0.0
    %v1183 = vand.u32 %v703, 4294901760
    %v1184 = vsub.f32 %v703, %v1183
    %v1185 = vand.u32 %v1184, 4294901760
    %1186 = vmatpush1.msra.mxu0 %v1185
    %1187 = vmatprep.subr.mxu0 0.0
    %v1188 = vand.u32 %v702, 4294901760
    %v1189 = vsub.f32 %v702, %v1188
    %v1190 = vand.u32 %v1189, 4294901760
    %1191 = vmatpush1.msra.mxu0 %v1190
    %1192 = vmatprep.subr.mxu0 0.0
    %v1193 = vand.u32 %v701, 4294901760
    %v1194 = vsub.f32 %v701, %v1193
    %v1195 = vand.u32 %v1194, 4294901760
    %1196 = vmatpush1.msra.mxu0 %v1195
    %1197 = vmatprep.subr.mxu0 0.0
    %v1198 = vand.u32 %v700, 4294901760
    %v1199 = vsub.f32 %v700, %v1198
    %v1200 = vand.u32 %v1199, 4294901760
    %1201 = vmatpush1.msra.mxu0 %v1200
    %1202 = vmatprep.subr.mxu0 0.0
    %v1203 = vand.u32 %v699, 4294901760
    %v1204 = vsub.f32 %v699, %v1203
    %v1205 = vand.u32 %v1204, 4294901760
    %1206 = vmatpush1.msra.mxu0 %v1205
    %1207 = vmatprep.subr.mxu0 0.0
    %v1208 = vand.u32 %v698, 4294901760
    %v1209 = vsub.f32 %v698, %v1208
    %v1210 = vand.u32 %v1209, 4294901760
    %1211 = vmatpush1.msra.mxu0 %v1210
    %1212 = vmatprep.subr.mxu0 0.0
    %v1213 = vand.u32 %v697, 4294901760
    %v1214 = vsub.f32 %v697, %v1213
    %v1215 = vand.u32 %v1214, 4294901760
    %1216 = vmatpush1.msra.mxu0 %v1215
    %1217 = vmatprep.subr.mxu0 0.0
    %v1218 = vand.u32 %v696, 4294901760
    %v1219 = vsub.f32 %v696, %v1218
    %v1220 = vand.u32 %v1219, 4294901760
    %1221 = vmatpush1.msra.mxu0 %v1220
    %1222 = vmatprep.subr.mxu0 0.0
    %v1223 = vand.u32 %v695, 4294901760
    %v1224 = vsub.f32 %v695, %v1223
    %v1225 = vand.u32 %v1224, 4294901760
    %1226 = vmatpush1.msra.mxu0 %v1225
    %1227 = vmatprep.subr.mxu0 0.0
    %1228 = vmatpush2.msra.mxu0 0.0
    %1229 = vmatprep.subr.mxu0 0.0
    %1230 = vmatpush2.msra.mxu0 0.0
    %1231 = vmatprep.subr.mxu0 0.0
    %1232 = vmatpush2.msra.mxu0 0.0
    %1233 = vmatprep.subr.mxu0 0.0
    %1234 = vmatpush2.msra.mxu0 0.0
    %1235 = vmatprep.subr.mxu0 0.0
    %1236 = vmatpush2.msra.mxu0 0.0
    %1237 = vmatprep.subr.mxu0 0.0
    %1238 = vmatpush2.msra.mxu0 0.0
    %1239 = vmatprep.subr.mxu0 0.0
    %1240 = vmatpush2.msra.mxu0 0.0
    %1241 = vmatprep.subr.mxu0 0.0
    %1242 = vmatpush2.msra.mxu0 0.0
    %1243 = vmatprep.subr.mxu0 0.0
    %1244 = vmatpush2.msra.mxu0 0.0
    %1245 = vmatprep.subr.mxu0 0.0
    %1246 = vmatpush2.msra.mxu0 0.0
    %1247 = vmatprep.subr.mxu0 0.0
    %1248 = vmatpush2.msra.mxu0 0.0
    %1249 = vmatprep.subr.mxu0 0.0
    %1250 = vmatpush2.msra.mxu0 0.0
    %1251 = vmatprep.subr.mxu0 0.0
    %1252 = vmatpush2.msra.mxu0 0.0
    %1253 = vmatprep.subr.mxu0 0.0
    %1254 = vmatpush2.msra.mxu0 0.0
    %1255 = vmatprep.subr.mxu0 0.0
    %1256 = vmatpush2.msra.mxu0 0.0
    %1257 = vmatprep.subr.mxu0 0.0
    %1258 = vmatpush2.msra.mxu0 0.0
    %1259 = vmatprep.mubr.f32.mxu0 0.0
    %v1260 = vand.u32 %v692, 4294901760
    %1261 = vmatmul.mubr.f32.gmra.mxu0 %v1260
    %v1262 = vpop.f32.mrf.mxu0
    %v1263 = vadd.f32 %v1144, %v1262
    %v1264 = vpop.f32.mrf.mxu0
    %1265 = vdwg.mxu0
    %1266 = vmatprep.subr.mxu0 0.0
    %v1267 = vand.u32 %v710, 4294901760
    %1268 = vmatpush1.msra.mxu0 %v1267
    %1269 = vmatprep.subr.mxu0 0.0
    %v1270 = vand.u32 %v709, 4294901760
    %1271 = vmatpush1.msra.mxu0 %v1270
    %1272 = vmatprep.subr.mxu0 0.0
    %v1273 = vand.u32 %v708, 4294901760
    %1274 = vmatpush1.msra.mxu0 %v1273
    %1275 = vmatprep.subr.mxu0 0.0
    %v1276 = vand.u32 %v707, 4294901760
    %1277 = vmatpush1.msra.mxu0 %v1276
    %1278 = vmatprep.subr.mxu0 0.0
    %v1279 = vand.u32 %v706, 4294901760
    %1280 = vmatpush1.msra.mxu0 %v1279
    %1281 = vmatprep.subr.mxu0 0.0
    %v1282 = vand.u32 %v705, 4294901760
    %1283 = vmatpush1.msra.mxu0 %v1282
    %1284 = vmatprep.subr.mxu0 0.0
    %v1285 = vand.u32 %v704, 4294901760
    %1286 = vmatpush1.msra.mxu0 %v1285
    %1287 = vmatprep.subr.mxu0 0.0
    %v1288 = vand.u32 %v703, 4294901760
    %1289 = vmatpush1.msra.mxu0 %v1288
    %1290 = vmatprep.subr.mxu0 0.0
    %v1291 = vand.u32 %v702, 4294901760
    %1292 = vmatpush1.msra.mxu0 %v1291
    %1293 = vmatprep.subr.mxu0 0.0
    %v1294 = vand.u32 %v701, 4294901760
    %1295 = vmatpush1.msra.mxu0 %v1294
    %1296 = vmatprep.subr.mxu0 0.0
    %v1297 = vand.u32 %v700, 4294901760
    %1298 = vmatpush1.msra.mxu0 %v1297
    %1299 = vmatprep.subr.mxu0 0.0
    %v1300 = vand.u32 %v699, 4294901760
    %1301 = vmatpush1.msra.mxu0 %v1300
    %1302 = vmatprep.subr.mxu0 0.0
    %v1303 = vand.u32 %v698, 4294901760
    %1304 = vmatpush1.msra.mxu0 %v1303
    %1305 = vmatprep.subr.mxu0 0.0
    %v1306 = vand.u32 %v697, 4294901760
    %1307 = vmatpush1.msra.mxu0 %v1306
    %1308 = vmatprep.subr.mxu0 0.0
    %v1309 = vand.u32 %v696, 4294901760
    %1310 = vmatpush1.msra.mxu0 %v1309
    %1311 = vmatprep.subr.mxu0 0.0
    %v1312 = vand.u32 %v695, 4294901760
    %1313 = vmatpush1.msra.mxu0 %v1312
    %1314 = vmatprep.subr.mxu0 0.0
    %1315 = vmatpush2.msra.mxu0 0.0
    %1316 = vmatprep.subr.mxu0 0.0
    %1317 = vmatpush2.msra.mxu0 0.0
    %1318 = vmatprep.subr.mxu0 0.0
    %1319 = vmatpush2.msra.mxu0 0.0
    %1320 = vmatprep.subr.mxu0 0.0
    %1321 = vmatpush2.msra.mxu0 0.0
    %1322 = vmatprep.subr.mxu0 0.0
    %1323 = vmatpush2.msra.mxu0 0.0
    %1324 = vmatprep.subr.mxu0 0.0
    %1325 = vmatpush2.msra.mxu0 0.0
    %1326 = vmatprep.subr.mxu0 0.0
    %1327 = vmatpush2.msra.mxu0 0.0
    %1328 = vmatprep.subr.mxu0 0.0
    %1329 = vmatpush2.msra.mxu0 0.0
    %1330 = vmatprep.subr.mxu0 0.0
    %1331 = vmatpush2.msra.mxu0 0.0
    %1332 = vmatprep.subr.mxu0 0.0
    %1333 = vmatpush2.msra.mxu0 0.0
    %1334 = vmatprep.subr.mxu0 0.0
    %1335 = vmatpush2.msra.mxu0 0.0
    %1336 = vmatprep.subr.mxu0 0.0
    %1337 = vmatpush2.msra.mxu0 0.0
    %1338 = vmatprep.subr.mxu0 0.0
    %1339 = vmatpush2.msra.mxu0 0.0
    %1340 = vmatprep.subr.mxu0 0.0
    %1341 = vmatpush2.msra.mxu0 0.0
    %1342 = vmatprep.subr.mxu0 0.0
    %1343 = vmatpush2.msra.mxu0 0.0
    %1344 = vmatprep.subr.mxu0 0.0
    %1345 = vmatpush2.msra.mxu0 0.0
    %1346 = vmatprep.mubr.f32.mxu0 0.0
    %v1347 = vand.u32 %v692, 4294901760
    %1348 = vmatmul.mubr.f32.gmra.mxu0 %v1347
    %v1349 = vpop.f32.mrf.mxu0
    %v1350 = vadd.f32 %v1263, %v1349
    %v1351 = vpop.f32.mrf.mxu0
    %1352 = vdwg.mxu0
    %1353 = vst [vmem:[%s3] sm:$0x1] %v1350
    // Predicated region
    $region18: #{rnn_fc_forward.1} parent=1 // pred_check
      _
    $region19: #{rnn_fc_forward.1} parent=1 // pred_check_branch
      %1355 = sbr.rel (0) target = $region21
    $region20: #{rnn_fc_forward.1} parent=1 // pred_region
      _
    $region21: #{rnn_fc_forward.1} parent=1 // pred_fallthru
      _
    // Predicated region
    $region22: #{rnn_fc_forward.1} parent=1 // pred_check
      _
    $region23: #{rnn_fc_forward.1} parent=1 // pred_check_branch
      %1357 = sbr.rel (0) target = $region25
    $region24: #{rnn_fc_forward.1} parent=1 // pred_region
      _
    $region25: #{rnn_fc_forward.1} parent=1 // pred_fallthru
      _
    // Predicated region
    $region26: #{rnn_fc_forward.1} parent=1 // pred_check
      _
    $region27: #{rnn_fc_forward.1} parent=1 // pred_check_branch
      %1359 = sbr.rel (0) target = $region29
    $region28: #{rnn_fc_forward.1} parent=1 // pred_region
      _
    $region29: #{rnn_fc_forward.1} parent=1 // pred_fallthru
      _
    // Predicated region
    $region30: #{rnn_fc_forward.1} parent=1 // pred_check
      _
    $region31: #{rnn_fc_forward.1} parent=1 // pred_check_branch
      %1361 = sbr.rel (0) target = $region33
    $region32: #{rnn_fc_forward.1} parent=1 // pred_region
      _
    $region33: #{rnn_fc_forward.1} parent=1 // pred_fallthru
      _
    %1362 = vsyncpa [#allocation4], 1

</llo_original>
